<compile_context>
chip_gen: v5e
topology: v5e:2x2
jax: 0.10.0
libtpu: 0.0.40
codegen_flags: <defaults>
</compile_context>

<pallas_src>
import functools

import jax
import jax.numpy as jnp
from jax.experimental import pallas as pl
from jax.experimental.pallas import tpu as pltpu


DEFAULT_TILE_ROWS = 512  # packed rows per grid step (multiple of 8)


def _pack_factor(dim):
    """Rows packed into one 128-lane output row (1 if dim doesn't divide 128)."""
    return 128 // dim if (dim < 128 and 128 % dim == 0) else 1


def _tile_geometry(n, pack, tile_rows=DEFAULT_TILE_ROWS):
    rows = max(1, -(-n // pack))           # ceil(n / pack)
    if rows <= tile_rows:
        tile = rows                        # single step; block == full extent
        rows_pad = rows
    else:
        tile = tile_rows                   # multiple of 8
        rows_pad = ((rows + tile - 1) // tile) * tile
    return rows_pad, tile


# ----------------------------------------------------------------------------
# Discrete path:  out = table[x - min]   (one-hot MXU matmul, exact)
# ----------------------------------------------------------------------------
def _discrete_kernel(idx_ref, table_ref, out_ref, *, min_val, vocab, pack):
    # idx_ref:   (TILE_R, PACK)        int32 raw indices (min NOT subtracted)
    # table_ref: (PACK*V, PACK*D)      f32 block-diagonal packed table (resident)
    # out_ref:   (TILE_R, PACK*D)      f32 packed, lane-dense output
    tile_r = idx_ref.shape[0]
    idx = idx_ref[...]                                             # (TILE_R, PACK)
    # min folded into the iota (one compare, no index subtraction)
    codes = jax.lax.broadcasted_iota(jnp.int32, (tile_r, vocab), 1) + min_val
    acc = None
    for j in range(pack):                                          # small static unroll
        onehot = (idx[:, j:j + 1] == codes).astype(jnp.float32)    # (TILE_R, V)
        part = jnp.dot(
            onehot,
            table_ref[pl.ds(j * vocab, vocab), :],                 # (V, PACK*D)
            preferred_element_type=jnp.float32,
            precision=jax.lax.Precision.HIGHEST,                   # exact row select
        )
        acc = part if acc is None else acc + part
    out_ref[...] = acc


def discrete_embed(idx_flat, table_packed, *, min_val, vocab, dim, pack,
                   tile_rows=DEFAULT_TILE_ROWS):
    """idx_flat: (N,) int; table_packed: (pack*V, pack*D) f32 -> (N, D) f32."""
    n = idx_flat.shape[0]
    rows_pad, tile = _tile_geometry(n, pack, tile_rows)
    pad = rows_pad * pack - n
    idx = idx_flat.astype(jnp.int32)
    if pad:
        # pad with an in-range index; padded rows are sliced off afterwards
        idx = jnp.concatenate([idx, jnp.full((pad,), min_val, jnp.int32)])
    idx2d = idx.reshape(rows_pad, pack)
    out_w = pack * dim
    kernel = functools.partial(_discrete_kernel, min_val=min_val, vocab=vocab,
                               pack=pack)
    out = pl.pallas_call(
        kernel,
        out_shape=jax.ShapeDtypeStruct((rows_pad, out_w), jnp.float32),
        grid=(rows_pad // tile,),
        in_specs=[
            pl.BlockSpec((tile, pack), lambda i: (i, 0)),            # row tile
            pl.BlockSpec((pack * vocab, out_w), lambda i: (0, 0)),   # resident table
        ],
        out_specs=pl.BlockSpec((tile, out_w), lambda i: (i, 0)),
        compiler_params=pltpu.CompilerParams(
            dimension_semantics=("parallel",)),
    )(idx2d, table_packed)
    # (rows_pad, pack*D) is the row-major view of (rows_pad*pack, D): reshape is free
    return out.reshape(rows_pad * pack, dim)[:n]


# ----------------------------------------------------------------------------
# Continuous path:  out = x[..., None] * W[:, 0] + b   (nn.Linear(1, D), VPU FMA)
# ----------------------------------------------------------------------------
def _continuous_kernel(x_ref, w_ref, b_ref, out_ref, *, pack):
    # x_ref: (TILE_R, PACK) f32, w_ref: (PACK, PACK*D) block-diag, b_ref: (1, PACK*D)
    x = x_ref[...]
    w = w_ref[...]
    acc = x[:, 0:1] * w[0:1, :]
    for j in range(1, pack):
        acc = acc + x[:, j:j + 1] * w[j:j + 1, :]
    out_ref[...] = acc + b_ref[...]


def continuous_embed(x_flat, w_packed, b_packed, *, dim, pack,
                     tile_rows=DEFAULT_TILE_ROWS):
    """x_flat: (N,) f32; w_packed: (pack, pack*D); b_packed: (1, pack*D) -> (N, D)."""
    n = x_flat.shape[0]
    rows_pad, tile = _tile_geometry(n, pack, tile_rows)
    pad = rows_pad * pack - n
    x = x_flat.astype(jnp.float32)
    if pad:
        x = jnp.concatenate([x, jnp.zeros((pad,), jnp.float32)])
    x2d = x.reshape(rows_pad, pack)
    out_w = pack * dim
    kernel = functools.partial(_continuous_kernel, pack=pack)
    out = pl.pallas_call(
        kernel,
        out_shape=jax.ShapeDtypeStruct((rows_pad, out_w), jnp.float32),
        grid=(rows_pad // tile,),
        in_specs=[
            pl.BlockSpec((tile, pack), lambda i: (i, 0)),     # row tile
            pl.BlockSpec((pack, out_w), lambda i: (0, 0)),    # resident weight
            pl.BlockSpec((1, out_w), lambda i: (0, 0)),       # resident bias
        ],
        out_specs=pl.BlockSpec((tile, out_w), lambda i: (i, 0)),
        compiler_params=pltpu.CompilerParams(
            dimension_semantics=("parallel",)),
    )(x2d, w_packed, b_packed)
    return out.reshape(rows_pad * pack, dim)[:n]


# ----------------------------------------------------------------------------
# Input module equivalent (parameter setup + dispatch is plain JAX glue)
# ----------------------------------------------------------------------------
class InputPallas:
    """JAX/Pallas equivalent of forge.ethyr.torch.policy.embed.Input."""

    def __init__(self, kind, embed_dim, key, *, var_range=None, var_min=None):
        self.kind = kind
        self.dim = int(embed_dim)
        self.pack = _pack_factor(self.dim)
        eye = jnp.eye(self.pack, dtype=jnp.float32)
        if kind == "discrete":
            self.min = int(var_min)
            self.range = int(var_range)
            # torch.nn.Embedding default init ~ N(0, 1)
            self.table = jax.random.normal(key, (self.range, self.dim), jnp.float32)
            # Block-diagonal packed table (pack*V, pack*D): row V*j+v holds
            # table[v] in lanes [D*j, D*(j+1)) -> single lane-dense MXU output.
            self.table_packed = jnp.kron(eye, self.table)
        elif kind == "continuous":
            # torch.nn.Linear(1, dim): weight (dim, 1), bias (dim,)
            kw, kb = jax.random.split(key)
            bound = 1.0  # kaiming-uniform bound for fan_in=1
            self.weight = jax.random.uniform(kw, (self.dim, 1), jnp.float32,
                                             -bound, bound)
            self.bias = jax.random.uniform(kb, (self.dim,), jnp.float32,
                                           -bound, bound)
            self.w_packed = jnp.kron(eye, self.weight.reshape(1, self.dim))
            self.b_packed = jnp.tile(self.bias.reshape(1, self.dim), (1, self.pack))
        else:
            raise ValueError(kind)

    def __call__(self, x):
        lead = x.shape
        n = 1
        for s in lead:
            n *= int(s)
        if self.kind == "discrete":
            out = discrete_embed(x.reshape(n), self.table_packed,
                                 min_val=self.min, vocab=self.range,
                                 dim=self.dim, pack=self.pack)
        else:
            out = continuous_embed(x.reshape(n), self.w_packed, self.b_packed,
                                   dim=self.dim, pack=self.pack)
        return out.reshape(*lead, self.dim)


if __name__ == "__main__":
    key = jax.random.PRNGKey(0)
    k_disc, k_cont, k1, k2, k3, k4 = jax.random.split(key, 6)

    EMBED = 32
    VAR_RANGE, VAR_MIN = 16, 2

    # ---- small shapes (module-scale) ----
    B, S = 2, 8
    disc = InputPallas("discrete", EMBED, k_disc,
                       var_range=VAR_RANGE, var_min=VAR_MIN)
    x_disc = jax.random.randint(k1, (B, S), VAR_MIN, VAR_MIN + VAR_RANGE, jnp.int32)
    y_disc = jax.block_until_ready(disc(x_disc))
    ref_disc = disc.table[(x_disc - VAR_MIN).reshape(-1)].reshape(B, S, EMBED)
    assert y_disc.shape == (B, S, EMBED)
    assert jnp.allclose(y_disc, ref_disc, atol=1e-5, rtol=1e-5), "discrete mismatch"

    cont = InputPallas("continuous", EMBED, k_cont)
    x_cont = jax.random.normal(k2, (B, S), jnp.float32)
    y_cont = jax.block_until_ready(cont(x_cont))
    ref_cont = x_cont[..., None] * cont.weight[:, 0] + cont.bias
    assert y_cont.shape == (B, S, EMBED)
    assert jnp.allclose(y_cont, ref_cont, atol=1e-5, rtol=1e-5), "continuous mismatch"

    # ---- larger shapes: exercise multi-step grid + padding path ----
    B2, S2 = 4, 600   # N=2400 -> 600 packed rows -> tile 512, padded to 1024, grid=2
    x_disc2 = jax.random.randint(k3, (B2, S2), VAR_MIN, VAR_MIN + VAR_RANGE, jnp.int32)
    y2 = jax.block_until_ready(disc(x_disc2))
    ref2 = disc.table[(x_disc2 - VAR_MIN).reshape(-1)].reshape(B2, S2, EMBED)
    assert jnp.allclose(y2, ref2, atol=1e-5, rtol=1e-5), "discrete mismatch (tiled)"

    x_cont2 = jax.random.normal(k4, (B2, S2), jnp.float32)
    y3 = jax.block_until_ready(cont(x_cont2))
    ref3 = x_cont2[..., None] * cont.weight[:, 0] + cont.bias
    assert jnp.allclose(y3, ref3, atol=1e-5, rtol=1e-5), "continuous mismatch (tiled)"

    print("KERNEL_OK")
</pallas_src>

<mosaic_0001>
module attributes {stable_mosaic.version = 11 : i64} {
  func.func @_discrete_kernel(%arg0: i32, %arg1: memref<4x4xi32, #tpu.memory_space<vmem>>, %arg2: memref<64x128xf32, #tpu.memory_space<vmem>>, %arg3: memref<4x128xf32, #tpu.memory_space<vmem>>) attributes {dimension_semantics = [#tpu.dimension_semantics<parallel>], iteration_bounds = array<i64: 1>, scalar_prefetch = 0 : i64, scratch_operands = 0 : i64, tpu.core_type = #tpu.core_type<tc>, window_params = [{transform_indices = @transform_0, window_bounds = array<i64: 4, 4>}, {pipeline_mode = #tpu.pipeline_mode<synchronous>, transform_indices = @transform_1, window_bounds = array<i64: 64, 128>}, {transform_indices = @transform_2, window_bounds = array<i64: 4, 128>}]} {
    %c0 = arith.constant 0 : index
    %c0_0 = arith.constant 0 : index
    %0 = vector.load %arg1[%c0, %c0_0] : memref<4x4xi32, #tpu.memory_space<vmem>>, vector<4x4xi32>
    %1 = tpu.iota {dimensions = array<i32: 1>} : vector<4x16xi32>
    %c2_i32 = arith.constant 2 : i32
    %2 = vector.broadcast %c2_i32 : i32 to vector<4x16xi32>
    %3 = arith.addi %1, %2 : vector<4x16xi32>
    %4 = vector.extract_strided_slice %0 {offsets = [0, 0], sizes = [4, 1], strides = [1, 1]} : vector<4x4xi32> to vector<4x1xi32>
    %5 = vector.broadcast %4 : vector<4x1xi32> to vector<4x16xi32>
    %6 = arith.cmpi eq, %5, %3 : vector<4x16xi32>
    %7 = arith.extui %6 : vector<4x16xi1> to vector<4x16xi32>
    %8 = arith.sitofp %7 : vector<4x16xi32> to vector<4x16xf32>
    %c0_1 = arith.constant 0 : index
    %c0_2 = arith.constant 0 : index
    %9 = vector.load %arg2[%c0_1, %c0_2] : memref<64x128xf32, #tpu.memory_space<vmem>>, vector<16x128xf32>
    %cst = arith.constant dense<0.000000e+00> : vector<4x128xf32>
    %10 = tpu.matmul %8, %9, %cst {dimension_numbers = #tpu.dot_dimension_numbers<[1], [0], [0], [1], [0, 0, 1, 1], [], []>, precision = #tpu.contract_precision<fp32>} : vector<4x16xf32>, vector<16x128xf32>, vector<4x128xf32> -> vector<4x128xf32>
    %11 = vector.extract_strided_slice %0 {offsets = [0, 1], sizes = [4, 1], strides = [1, 1]} : vector<4x4xi32> to vector<4x1xi32>
    %12 = vector.broadcast %11 : vector<4x1xi32> to vector<4x16xi32>
    %13 = arith.cmpi eq, %12, %3 : vector<4x16xi32>
    %14 = arith.extui %13 : vector<4x16xi1> to vector<4x16xi32>
    %15 = arith.sitofp %14 : vector<4x16xi32> to vector<4x16xf32>
    %c16 = arith.constant 16 : index
    %c0_3 = arith.constant 0 : index
    %16 = vector.load %arg2[%c16, %c0_3] : memref<64x128xf32, #tpu.memory_space<vmem>>, vector<16x128xf32>
    %cst_4 = arith.constant dense<0.000000e+00> : vector<4x128xf32>
    %17 = tpu.matmul %15, %16, %cst_4 {dimension_numbers = #tpu.dot_dimension_numbers<[1], [0], [0], [1], [0, 0, 1, 1], [], []>, precision = #tpu.contract_precision<fp32>} : vector<4x16xf32>, vector<16x128xf32>, vector<4x128xf32> -> vector<4x128xf32>
    %18 = arith.addf %10, %17 : vector<4x128xf32>
    %19 = vector.extract_strided_slice %0 {offsets = [0, 2], sizes = [4, 1], strides = [1, 1]} : vector<4x4xi32> to vector<4x1xi32>
    %20 = vector.broadcast %19 : vector<4x1xi32> to vector<4x16xi32>
    %21 = arith.cmpi eq, %20, %3 : vector<4x16xi32>
    %22 = arith.extui %21 : vector<4x16xi1> to vector<4x16xi32>
    %23 = arith.sitofp %22 : vector<4x16xi32> to vector<4x16xf32>
    %c32 = arith.constant 32 : index
    %c0_5 = arith.constant 0 : index
    %24 = vector.load %arg2[%c32, %c0_5] : memref<64x128xf32, #tpu.memory_space<vmem>>, vector<16x128xf32>
    %cst_6 = arith.constant dense<0.000000e+00> : vector<4x128xf32>
    %25 = tpu.matmul %23, %24, %cst_6 {dimension_numbers = #tpu.dot_dimension_numbers<[1], [0], [0], [1], [0, 0, 1, 1], [], []>, precision = #tpu.contract_precision<fp32>} : vector<4x16xf32>, vector<16x128xf32>, vector<4x128xf32> -> vector<4x128xf32>
    %26 = arith.addf %18, %25 : vector<4x128xf32>
    %27 = vector.extract_strided_slice %0 {offsets = [0, 3], sizes = [4, 1], strides = [1, 1]} : vector<4x4xi32> to vector<4x1xi32>
    %28 = vector.broadcast %27 : vector<4x1xi32> to vector<4x16xi32>
    %29 = arith.cmpi eq, %28, %3 : vector<4x16xi32>
    %30 = arith.extui %29 : vector<4x16xi1> to vector<4x16xi32>
    %31 = arith.sitofp %30 : vector<4x16xi32> to vector<4x16xf32>
    %c48 = arith.constant 48 : index
    %c0_7 = arith.constant 0 : index
    %32 = vector.load %arg2[%c48, %c0_7] : memref<64x128xf32, #tpu.memory_space<vmem>>, vector<16x128xf32>
    %cst_8 = arith.constant dense<0.000000e+00> : vector<4x128xf32>
    %33 = tpu.matmul %31, %32, %cst_8 {dimension_numbers = #tpu.dot_dimension_numbers<[1], [0], [0], [1], [0, 0, 1, 1], [], []>, precision = #tpu.contract_precision<fp32>} : vector<4x16xf32>, vector<16x128xf32>, vector<4x128xf32> -> vector<4x128xf32>
    %34 = arith.addf %26, %33 : vector<4x128xf32>
    %c0_9 = arith.constant 0 : index
    %c0_10 = arith.constant 0 : index
    %35 = vector.load %arg3[%c0_9, %c0_10] : memref<4x128xf32, #tpu.memory_space<vmem>>, vector<4x128xf32>
    tpu.vector_store %arg3[%c0_9, %c0_10], %34 {strides = array<i32>} : memref<4x128xf32, #tpu.memory_space<vmem>>, vector<4x128xf32>,
    return
  }
  func.func @transform_0(%arg0: i32) -> (i32, i32) {
    %c0_i32 = arith.constant 0 : i32
    %c0_i32_0 = arith.constant 0 : i32
    return %arg0, %c0_i32 : i32, i32
  }
  func.func @transform_1(%arg0: i32) -> (i32, i32) {
    %c0_i32 = arith.constant 0 : i32
    %c0_i32_0 = arith.constant 0 : i32
    %c0_i32_1 = arith.constant 0 : i32
    return %c0_i32, %c0_i32_0 : i32, i32
  }
  func.func @transform_2(%arg0: i32) -> (i32, i32) {
    %c0_i32 = arith.constant 0 : i32
    %c0_i32_0 = arith.constant 0 : i32
    return %arg0, %c0_i32 : i32, i32
  }
}

</mosaic_0001>

<llo_original>
// kernel: tpu_custom_call.1
$region0: #{tpu_custom_call.1}
  #allocation0 [shape = 'u32[]', space=smem, size = 0x4, offset = 0x4, fixed_abs, tag = 'smem constant byte address 0x4 - core index']
  #allocation1 [shape = 'u32[72,128]{1,0:T(1,128)}', space=vmem, size = 0x9000, scoped, tag = 'internal scratch']
  %s0 = inlined_call_operand.hbm [shape: s32[4,4], index: 0, kind: input, shape index: {}]
  %s1 = inlined_call_operand.hbm [shape: f32[64,128], index: 1, kind: input, shape index: {}]
  %s2 = inlined_call_operand.hbm [shape: f32[4,128], index: 2, kind: output, shape index: {}]
  %s3 = sld [smem:[#allocation0]]
  $region26: #{tpu_custom_call.1} parent=0
    _
  %s5 = ssub.s32 1, %s3
  %s6 = scalar_select 0, %s5, %s3
  $region1: #{tpu_custom_call.1} parent=0
    #allocation2 [shape = 'u8[2048]{0}', space=vmem, size = 0x800, scoped, tag = 'input window, operand 0, single buffered']
    #allocation3 [shape = 's32[1]{0}', space=sflag, size = 0x4, scoped, tag = 'scoped memory for tpu_custom_call.1']
    #allocation4 [shape = 's32[1]{0}', space=sflag, size = 0x4, scoped, tag = 'scoped memory for tpu_custom_call.1']
    #allocation5 [shape = 'u8[32768]{0}', space=vmem, size = 0x8000, scoped, tag = 'input window, operand 1, single buffered']
    #allocation6 [shape = 's32[1]{0}', space=sflag, size = 0x4, scoped, tag = 'scoped memory for tpu_custom_call.1']
    #allocation7 [shape = 'u8[2048]{0}', space=vmem, size = 0x800, scoped, tag = 'output window, operand 0, single buffered']
    %7 = vsyncpa [#allocation3], 0
    %8 = vsyncpa [#allocation6], 0
    %9 = vsyncpa [#allocation4], 0
    // Predicated region
    $region2: #{tpu_custom_call.1} parent=1 // pred_check
      _
    $region3: #{tpu_custom_call.1} parent=1 // pred_check_branch
      %11 = sbr.rel (0) target = $region5
    $region4: #{tpu_custom_call.1} parent=1 // pred_region
      %13 = vsyncadd [#allocation3], 0
      %s15 = sshll.u32 %s0, 4
      %s16 = int_to_ptr.hbm [resolvable:$true] %s15
      %s17 = sshll.u32 [#allocation2], 4
      %s18 = int_to_ptr.vmem [resolvable:$true] %s17
      %20 = dma.hbm_to_vmem [thread:$0]  %s16, 64, %s18, [#allocation3]
    $region5: #{tpu_custom_call.1} parent=1 // pred_fallthru
      _
    // Predicated region
    $region6: #{tpu_custom_call.1} parent=1 // pred_check
      _
    $region7: #{tpu_custom_call.1} parent=1 // pred_check_branch
      %22 = sbr.rel (0) target = $region9
    $region8: #{tpu_custom_call.1} parent=1 // pred_region
      %24 = vsyncadd [#allocation6], 0
      %s25 = sshll.u32 %s1, 4
      %s26 = int_to_ptr.hbm [resolvable:$true] %s25
      %s27 = sshll.u32 [#allocation5], 4
      %s28 = int_to_ptr.vmem [resolvable:$true] %s27
      %33 = dma.hbm_to_vmem [thread:$0]  %s26, 1024, %s28, [#allocation6], 128, 128, 8
    $region9: #{tpu_custom_call.1} parent=1 // pred_fallthru
      _
    // Predicated region
    $region10: #{tpu_custom_call.1} parent=1 // pred_check
      _
    $region11: #{tpu_custom_call.1} parent=1 // pred_check_branch
      %35 = sbr.rel (0) target = $region13
    $region12: #{tpu_custom_call.1} parent=1 // pred_region
      %37 = dma.done [#allocation3], 64
    $region13: #{tpu_custom_call.1} parent=1 // pred_fallthru
      _
    // Predicated region
    $region14: #{tpu_custom_call.1} parent=1 // pred_check
      _
    $region15: #{tpu_custom_call.1} parent=1 // pred_check_branch
      %39 = sbr.rel (0) target = $region17
    $region16: #{tpu_custom_call.1} parent=1 // pred_region
      %41 = dma.done [#allocation6], 1024
    $region17: #{tpu_custom_call.1} parent=1 // pred_fallthru
      _
    %v42 = vld [vmem:[#allocation2] sm:$0xf]
    %v43 = vlaneseq
    %v44 = vand.u32 %v43, 127
    %v45 = vadd.s32 %v44, 2
    %46 = vset.pattern.permute.xlu0 0
    %47 = vperm.xlu0 %46, %v42
    %v48 = vpop.permute.xlu0 %47
    %vm49 = vcmp.eq.s32.totalorder %v48, %v45
    %v50 = vsel %vm49, 1, 0
    %v51 = vcvt.s32.f32 %v50
    %v52 = vld [vmem:[#allocation5] sm:$0xff]
    %v53 = vld [vmem:[#allocation5 + $0x8] sm:$0xff]
    %54 = vset.pattern.permute.xlu0 1
    %55 = vperm.xlu0 %54, %v42
    %v56 = vpop.permute.xlu0 %55
    %vm57 = vcmp.eq.s32.totalorder %v56, %v45
    %v58 = vsel %vm57, 1, 0
    %v59 = vcvt.s32.f32 %v58
    %v60 = vld [vmem:[#allocation5 + $0x10] sm:$0xff]
    %v61 = vld [vmem:[#allocation5 + $0x18] sm:$0xff]
    %vm62 = vcmask 130048
    %v64 = vsel %vm62, %v59, 0
    %66 = vmatpush.msra.mxu0 0.0
    %67 = vmatpush.msra.mxu0 0.0
    %68 = vmatpush.msra.mxu0 0.0
    %69 = vmatpush.msra.mxu0 0.0
    %70 = vmatpush.msra.mxu0 0.0
    %71 = vmatpush.msra.mxu0 0.0
    %72 = vmatpush.msra.mxu0 0.0
    %73 = vmatpush.msra.mxu0 0.0
    %74 = vmatpush.msra.mxu0 0.0
    %75 = vmatpush.msra.mxu0 0.0
    %76 = vmatpush.msra.mxu0 0.0
    %77 = vmatpush.msra.mxu0 0.0
    %78 = vmatpush.msra.mxu0 0.0
    %79 = vmatpush.msra.mxu0 0.0
    %v80 = vand.u32 %v61, 4294901760
    %81 = vmatpush.msra.mxu0 %v80
    %v82 = vand.u32 %v60, 4294901760
    %83 = vmatpush.msra.mxu0 %v82
    %v84 = vand.u32 %v64, 4294901760
    %v85 = vsub.f32 %v64, %v84
    %v86 = vand.u32 %v85, 4294901760
    %v87 = vsub.f32 %v85, %v86
    %v88 = vand.u32 %v87, 4294901760
    %89 = vmatmul.f32.gmra.mxu0 %v88
    %v90 = vpop.f32.mrf.mxu0
    %v91 = vadd.f32 0.0, %v90
    %92 = vdwg.mxu0
    %93 = vmatpush.msra.mxu0 0.0
    %94 = vmatpush.msra.mxu0 0.0
    %95 = vmatpush.msra.mxu0 0.0
    %96 = vmatpush.msra.mxu0 0.0
    %97 = vmatpush.msra.mxu0 0.0
    %98 = vmatpush.msra.mxu0 0.0
    %99 = vmatpush.msra.mxu0 0.0
    %100 = vmatpush.msra.mxu0 0.0
    %101 = vmatpush.msra.mxu0 0.0
    %102 = vmatpush.msra.mxu0 0.0
    %103 = vmatpush.msra.mxu0 0.0
    %104 = vmatpush.msra.mxu0 0.0
    %105 = vmatpush.msra.mxu0 0.0
    %106 = vmatpush.msra.mxu0 0.0
    %v107 = vand.u32 %v61, 4294901760
    %v108 = vsub.f32 %v61, %v107
    %v109 = vand.u32 %v108, 4294901760
    %v110 = vsub.f32 %v108, %v109
    %v111 = vand.u32 %v110, 4294901760
    %112 = vmatpush.msra.mxu0 %v111
    %v113 = vand.u32 %v60, 4294901760
    %v114 = vsub.f32 %v60, %v113
    %v115 = vand.u32 %v114, 4294901760
    %v116 = vsub.f32 %v114, %v115
    %v117 = vand.u32 %v116, 4294901760
    %118 = vmatpush.msra.mxu0 %v117
    %v119 = vand.u32 %v64, 4294901760
    %120 = vmatmul.f32.gmra.mxu0 %v119
    %v121 = vpop.f32.mrf.mxu0
    %v122 = vadd.f32 %v91, %v121
    %123 = vdwg.mxu0
    %124 = vmatpush.msra.mxu0 0.0
    %125 = vmatpush.msra.mxu0 0.0
    %126 = vmatpush.msra.mxu0 0.0
    %127 = vmatpush.msra.mxu0 0.0
    %128 = vmatpush.msra.mxu0 0.0
    %129 = vmatpush.msra.mxu0 0.0
    %130 = vmatpush.msra.mxu0 0.0
    %131 = vmatpush.msra.mxu0 0.0
    %132 = vmatpush.msra.mxu0 0.0
    %133 = vmatpush.msra.mxu0 0.0
    %134 = vmatpush.msra.mxu0 0.0
    %135 = vmatpush.msra.mxu0 0.0
    %136 = vmatpush.msra.mxu0 0.0
    %137 = vmatpush.msra.mxu0 0.0
    %v138 = vand.u32 %v61, 4294901760
    %v139 = vsub.f32 %v61, %v138
    %140 = vmatpush.msra.mxu0 %v139
    %v141 = vand.u32 %v60, 4294901760
    %v142 = vsub.f32 %v60, %v141
    %143 = vmatpush.msra.mxu0 %v142
    %v144 = vand.u32 %v64, 4294901760
    %v145 = vsub.f32 %v64, %v144
    %146 = vmatmul.f32.gmra.mxu0 %v145
    %v147 = vpop.f32.mrf.mxu0
    %v148 = vadd.f32 %v122, %v147
    %149 = vdwg.mxu0
    %150 = vmatpush.msra.mxu0 0.0
    %151 = vmatpush.msra.mxu0 0.0
    %152 = vmatpush.msra.mxu0 0.0
    %153 = vmatpush.msra.mxu0 0.0
    %154 = vmatpush.msra.mxu0 0.0
    %155 = vmatpush.msra.mxu0 0.0
    %156 = vmatpush.msra.mxu0 0.0
    %157 = vmatpush.msra.mxu0 0.0
    %158 = vmatpush.msra.mxu0 0.0
    %159 = vmatpush.msra.mxu0 0.0
    %160 = vmatpush.msra.mxu0 0.0
    %161 = vmatpush.msra.mxu0 0.0
    %162 = vmatpush.msra.mxu0 0.0
    %163 = vmatpush.msra.mxu0 0.0
    %v164 = vand.u32 %v61, 4294901760
    %165 = vmatpush.msra.mxu0 %v164
    %v166 = vand.u32 %v60, 4294901760
    %167 = vmatpush.msra.mxu0 %v166
    %v168 = vand.u32 %v64, 4294901760
    %v169 = vsub.f32 %v64, %v168
    %v170 = vand.u32 %v169, 4294901760
    %171 = vmatmul.f32.gmra.mxu0 %v170
    %v172 = vpop.f32.mrf.mxu0
    %v173 = vadd.f32 %v148, %v172
    %174 = vdwg.mxu0
    %175 = vmatpush.msra.mxu0 0.0
    %176 = vmatpush.msra.mxu0 0.0
    %177 = vmatpush.msra.mxu0 0.0
    %178 = vmatpush.msra.mxu0 0.0
    %179 = vmatpush.msra.mxu0 0.0
    %180 = vmatpush.msra.mxu0 0.0
    %181 = vmatpush.msra.mxu0 0.0
    %182 = vmatpush.msra.mxu0 0.0
    %183 = vmatpush.msra.mxu0 0.0
    %184 = vmatpush.msra.mxu0 0.0
    %185 = vmatpush.msra.mxu0 0.0
    %186 = vmatpush.msra.mxu0 0.0
    %187 = vmatpush.msra.mxu0 0.0
    %188 = vmatpush.msra.mxu0 0.0
    %v189 = vand.u32 %v61, 4294901760
    %v190 = vsub.f32 %v61, %v189
    %v191 = vand.u32 %v190, 4294901760
    %192 = vmatpush.msra.mxu0 %v191
    %v193 = vand.u32 %v60, 4294901760
    %v194 = vsub.f32 %v60, %v193
    %v195 = vand.u32 %v194, 4294901760
    %196 = vmatpush.msra.mxu0 %v195
    %v197 = vand.u32 %v64, 4294901760
    %198 = vmatmul.f32.gmra.mxu0 %v197
    %v199 = vpop.f32.mrf.mxu0
    %v200 = vadd.f32 %v173, %v199
    %201 = vdwg.mxu0
    %202 = vmatpush.msra.mxu0 0.0
    %203 = vmatpush.msra.mxu0 0.0
    %204 = vmatpush.msra.mxu0 0.0
    %205 = vmatpush.msra.mxu0 0.0
    %206 = vmatpush.msra.mxu0 0.0
    %207 = vmatpush.msra.mxu0 0.0
    %208 = vmatpush.msra.mxu0 0.0
    %209 = vmatpush.msra.mxu0 0.0
    %210 = vmatpush.msra.mxu0 0.0
    %211 = vmatpush.msra.mxu0 0.0
    %212 = vmatpush.msra.mxu0 0.0
    %213 = vmatpush.msra.mxu0 0.0
    %214 = vmatpush.msra.mxu0 0.0
    %215 = vmatpush.msra.mxu0 0.0
    %v216 = vand.u32 %v61, 4294901760
    %217 = vmatpush.msra.mxu0 %v216
    %v218 = vand.u32 %v60, 4294901760
    %219 = vmatpush.msra.mxu0 %v218
    %v220 = vand.u32 %v64, 4294901760
    %221 = vmatmul.f32.gmra.mxu0 %v220
    %v222 = vpop.f32.mrf.mxu0
    %v223 = vadd.f32 %v200, %v222
    %224 = vdwg.mxu0
    %v226 = vsel %vm62, %v51, 0
    %228 = vmatpush.msra.mxu0 0.0
    %229 = vmatpush.msra.mxu0 0.0
    %230 = vmatpush.msra.mxu0 0.0
    %231 = vmatpush.msra.mxu0 0.0
    %232 = vmatpush.msra.mxu0 0.0
    %233 = vmatpush.msra.mxu0 0.0
    %234 = vmatpush.msra.mxu0 0.0
    %235 = vmatpush.msra.mxu0 0.0
    %236 = vmatpush.msra.mxu0 0.0
    %237 = vmatpush.msra.mxu0 0.0
    %238 = vmatpush.msra.mxu0 0.0
    %239 = vmatpush.msra.mxu0 0.0
    %240 = vmatpush.msra.mxu0 0.0
    %241 = vmatpush.msra.mxu0 0.0
    %v242 = vand.u32 %v53, 4294901760
    %243 = vmatpush.msra.mxu0 %v242
    %v244 = vand.u32 %v52, 4294901760
    %245 = vmatpush.msra.mxu0 %v244
    %v246 = vand.u32 %v226, 4294901760
    %v247 = vsub.f32 %v226, %v246
    %v248 = vand.u32 %v247, 4294901760
    %v249 = vsub.f32 %v247, %v248
    %v250 = vand.u32 %v249, 4294901760
    %251 = vmatmul.f32.gmra.mxu0 %v250
    %v252 = vpop.f32.mrf.mxu0
    %v253 = vadd.f32 %v223, %v252
    %254 = vdwg.mxu0
    %255 = vmatpush.msra.mxu0 0.0
    %256 = vmatpush.msra.mxu0 0.0
    %257 = vmatpush.msra.mxu0 0.0
    %258 = vmatpush.msra.mxu0 0.0
    %259 = vmatpush.msra.mxu0 0.0
    %260 = vmatpush.msra.mxu0 0.0
    %261 = vmatpush.msra.mxu0 0.0
    %262 = vmatpush.msra.mxu0 0.0
    %263 = vmatpush.msra.mxu0 0.0
    %264 = vmatpush.msra.mxu0 0.0
    %265 = vmatpush.msra.mxu0 0.0
    %266 = vmatpush.msra.mxu0 0.0
    %267 = vmatpush.msra.mxu0 0.0
    %268 = vmatpush.msra.mxu0 0.0
    %v269 = vand.u32 %v53, 4294901760
    %v270 = vsub.f32 %v53, %v269
    %v271 = vand.u32 %v270, 4294901760
    %v272 = vsub.f32 %v270, %v271
    %v273 = vand.u32 %v272, 4294901760
    %274 = vmatpush.msra.mxu0 %v273
    %v275 = vand.u32 %v52, 4294901760
    %v276 = vsub.f32 %v52, %v275
    %v277 = vand.u32 %v276, 4294901760
    %v278 = vsub.f32 %v276, %v277
    %v279 = vand.u32 %v278, 4294901760
    %280 = vmatpush.msra.mxu0 %v279
    %v281 = vand.u32 %v226, 4294901760
    %282 = vmatmul.f32.gmra.mxu0 %v281
    %v283 = vpop.f32.mrf.mxu0
    %v284 = vadd.f32 %v253, %v283
    %285 = vdwg.mxu0
    %286 = vmatpush.msra.mxu0 0.0
    %287 = vmatpush.msra.mxu0 0.0
    %288 = vmatpush.msra.mxu0 0.0
    %289 = vmatpush.msra.mxu0 0.0
    %290 = vmatpush.msra.mxu0 0.0
    %291 = vmatpush.msra.mxu0 0.0
    %292 = vmatpush.msra.mxu0 0.0
    %293 = vmatpush.msra.mxu0 0.0
    %294 = vmatpush.msra.mxu0 0.0
    %295 = vmatpush.msra.mxu0 0.0
    %296 = vmatpush.msra.mxu0 0.0
    %297 = vmatpush.msra.mxu0 0.0
    %298 = vmatpush.msra.mxu0 0.0
    %299 = vmatpush.msra.mxu0 0.0
    %v300 = vand.u32 %v53, 4294901760
    %v301 = vsub.f32 %v53, %v300
    %302 = vmatpush.msra.mxu0 %v301
    %v303 = vand.u32 %v52, 4294901760
    %v304 = vsub.f32 %v52, %v303
    %305 = vmatpush.msra.mxu0 %v304
    %v306 = vand.u32 %v226, 4294901760
    %v307 = vsub.f32 %v226, %v306
    %308 = vmatmul.f32.gmra.mxu0 %v307
    %v309 = vpop.f32.mrf.mxu0
    %v310 = vadd.f32 %v284, %v309
    %311 = vdwg.mxu0
    %312 = vmatpush.msra.mxu0 0.0
    %313 = vmatpush.msra.mxu0 0.0
    %314 = vmatpush.msra.mxu0 0.0
    %315 = vmatpush.msra.mxu0 0.0
    %316 = vmatpush.msra.mxu0 0.0
    %317 = vmatpush.msra.mxu0 0.0
    %318 = vmatpush.msra.mxu0 0.0
    %319 = vmatpush.msra.mxu0 0.0
    %320 = vmatpush.msra.mxu0 0.0
    %321 = vmatpush.msra.mxu0 0.0
    %322 = vmatpush.msra.mxu0 0.0
    %323 = vmatpush.msra.mxu0 0.0
    %324 = vmatpush.msra.mxu0 0.0
    %325 = vmatpush.msra.mxu0 0.0
    %v326 = vand.u32 %v53, 4294901760
    %327 = vmatpush.msra.mxu0 %v326
    %v328 = vand.u32 %v52, 4294901760
    %329 = vmatpush.msra.mxu0 %v328
    %v330 = vand.u32 %v226, 4294901760
    %v331 = vsub.f32 %v226, %v330
    %v332 = vand.u32 %v331, 4294901760
    %333 = vmatmul.f32.gmra.mxu0 %v332
    %v334 = vpop.f32.mrf.mxu0
    %v335 = vadd.f32 %v310, %v334
    %336 = vdwg.mxu0
    %337 = vmatpush.msra.mxu0 0.0
    %338 = vmatpush.msra.mxu0 0.0
    %339 = vmatpush.msra.mxu0 0.0
    %340 = vmatpush.msra.mxu0 0.0
    %341 = vmatpush.msra.mxu0 0.0
    %342 = vmatpush.msra.mxu0 0.0
    %343 = vmatpush.msra.mxu0 0.0
    %344 = vmatpush.msra.mxu0 0.0
    %345 = vmatpush.msra.mxu0 0.0
    %346 = vmatpush.msra.mxu0 0.0
    %347 = vmatpush.msra.mxu0 0.0
    %348 = vmatpush.msra.mxu0 0.0
    %349 = vmatpush.msra.mxu0 0.0
    %350 = vmatpush.msra.mxu0 0.0
    %v351 = vand.u32 %v53, 4294901760
    %v352 = vsub.f32 %v53, %v351
    %v353 = vand.u32 %v352, 4294901760
    %354 = vmatpush.msra.mxu0 %v353
    %v355 = vand.u32 %v52, 4294901760
    %v356 = vsub.f32 %v52, %v355
    %v357 = vand.u32 %v356, 4294901760
    %358 = vmatpush.msra.mxu0 %v357
    %v359 = vand.u32 %v226, 4294901760
    %360 = vmatmul.f32.gmra.mxu0 %v359
    %v361 = vpop.f32.mrf.mxu0
    %v362 = vadd.f32 %v335, %v361
    %363 = vdwg.mxu0
    %364 = vmatpush.msra.mxu0 0.0
    %365 = vmatpush.msra.mxu0 0.0
    %366 = vmatpush.msra.mxu0 0.0
    %367 = vmatpush.msra.mxu0 0.0
    %368 = vmatpush.msra.mxu0 0.0
    %369 = vmatpush.msra.mxu0 0.0
    %370 = vmatpush.msra.mxu0 0.0
    %371 = vmatpush.msra.mxu0 0.0
    %372 = vmatpush.msra.mxu0 0.0
    %373 = vmatpush.msra.mxu0 0.0
    %374 = vmatpush.msra.mxu0 0.0
    %375 = vmatpush.msra.mxu0 0.0
    %376 = vmatpush.msra.mxu0 0.0
    %377 = vmatpush.msra.mxu0 0.0
    %v378 = vand.u32 %v53, 4294901760
    %379 = vmatpush.msra.mxu0 %v378
    %v380 = vand.u32 %v52, 4294901760
    %381 = vmatpush.msra.mxu0 %v380
    %v382 = vand.u32 %v226, 4294901760
    %383 = vmatmul.f32.gmra.mxu0 %v382
    %v384 = vpop.f32.mrf.mxu0
    %v385 = vadd.f32 %v362, %v384
    %386 = vdwg.mxu0
    %387 = vset.pattern.permute.xlu0 2
    %388 = vperm.xlu0 %387, %v42
    %v389 = vpop.permute.xlu0 %388
    %vm390 = vcmp.eq.s32.totalorder %v389, %v45
    %v391 = vsel %vm390, 1, 0
    %v392 = vcvt.s32.f32 %v391
    %v393 = vld [vmem:[#allocation5 + $0x20] sm:$0xff]
    %v394 = vld [vmem:[#allocation5 + $0x28] sm:$0xff]
    %v396 = vsel %vm62, %v392, 0
    %398 = vmatpush.msra.mxu0 0.0
    %399 = vmatpush.msra.mxu0 0.0
    %400 = vmatpush.msra.mxu0 0.0
    %401 = vmatpush.msra.mxu0 0.0
    %402 = vmatpush.msra.mxu0 0.0
    %403 = vmatpush.msra.mxu0 0.0
    %404 = vmatpush.msra.mxu0 0.0
    %405 = vmatpush.msra.mxu0 0.0
    %406 = vmatpush.msra.mxu0 0.0
    %407 = vmatpush.msra.mxu0 0.0
    %408 = vmatpush.msra.mxu0 0.0
    %409 = vmatpush.msra.mxu0 0.0
    %410 = vmatpush.msra.mxu0 0.0
    %411 = vmatpush.msra.mxu0 0.0
    %v412 = vand.u32 %v394, 4294901760
    %413 = vmatpush.msra.mxu0 %v412
    %v414 = vand.u32 %v393, 4294901760
    %415 = vmatpush.msra.mxu0 %v414
    %v416 = vand.u32 %v396, 4294901760
    %v417 = vsub.f32 %v396, %v416
    %v418 = vand.u32 %v417, 4294901760
    %v419 = vsub.f32 %v417, %v418
    %v420 = vand.u32 %v419, 4294901760
    %421 = vmatmul.f32.gmra.mxu0 %v420
    %v422 = vpop.f32.mrf.mxu0
    %v423 = vadd.f32 0.0, %v422
    %424 = vdwg.mxu0
    %425 = vmatpush.msra.mxu0 0.0
    %426 = vmatpush.msra.mxu0 0.0
    %427 = vmatpush.msra.mxu0 0.0
    %428 = vmatpush.msra.mxu0 0.0
    %429 = vmatpush.msra.mxu0 0.0
    %430 = vmatpush.msra.mxu0 0.0
    %431 = vmatpush.msra.mxu0 0.0
    %432 = vmatpush.msra.mxu0 0.0
    %433 = vmatpush.msra.mxu0 0.0
    %434 = vmatpush.msra.mxu0 0.0
    %435 = vmatpush.msra.mxu0 0.0
    %436 = vmatpush.msra.mxu0 0.0
    %437 = vmatpush.msra.mxu0 0.0
    %438 = vmatpush.msra.mxu0 0.0
    %v439 = vand.u32 %v394, 4294901760
    %v440 = vsub.f32 %v394, %v439
    %v441 = vand.u32 %v440, 4294901760
    %v442 = vsub.f32 %v440, %v441
    %v443 = vand.u32 %v442, 4294901760
    %444 = vmatpush.msra.mxu0 %v443
    %v445 = vand.u32 %v393, 4294901760
    %v446 = vsub.f32 %v393, %v445
    %v447 = vand.u32 %v446, 4294901760
    %v448 = vsub.f32 %v446, %v447
    %v449 = vand.u32 %v448, 4294901760
    %450 = vmatpush.msra.mxu0 %v449
    %v451 = vand.u32 %v396, 4294901760
    %452 = vmatmul.f32.gmra.mxu0 %v451
    %v453 = vpop.f32.mrf.mxu0
    %v454 = vadd.f32 %v423, %v453
    %455 = vdwg.mxu0
    %456 = vmatpush.msra.mxu0 0.0
    %457 = vmatpush.msra.mxu0 0.0
    %458 = vmatpush.msra.mxu0 0.0
    %459 = vmatpush.msra.mxu0 0.0
    %460 = vmatpush.msra.mxu0 0.0
    %461 = vmatpush.msra.mxu0 0.0
    %462 = vmatpush.msra.mxu0 0.0
    %463 = vmatpush.msra.mxu0 0.0
    %464 = vmatpush.msra.mxu0 0.0
    %465 = vmatpush.msra.mxu0 0.0
    %466 = vmatpush.msra.mxu0 0.0
    %467 = vmatpush.msra.mxu0 0.0
    %468 = vmatpush.msra.mxu0 0.0
    %469 = vmatpush.msra.mxu0 0.0
    %v470 = vand.u32 %v394, 4294901760
    %v471 = vsub.f32 %v394, %v470
    %472 = vmatpush.msra.mxu0 %v471
    %v473 = vand.u32 %v393, 4294901760
    %v474 = vsub.f32 %v393, %v473
    %475 = vmatpush.msra.mxu0 %v474
    %v476 = vand.u32 %v396, 4294901760
    %v477 = vsub.f32 %v396, %v476
    %478 = vmatmul.f32.gmra.mxu0 %v477
    %v479 = vpop.f32.mrf.mxu0
    %v480 = vadd.f32 %v454, %v479
    %481 = vdwg.mxu0
    %482 = vmatpush.msra.mxu0 0.0
    %483 = vmatpush.msra.mxu0 0.0
    %484 = vmatpush.msra.mxu0 0.0
    %485 = vmatpush.msra.mxu0 0.0
    %486 = vmatpush.msra.mxu0 0.0
    %487 = vmatpush.msra.mxu0 0.0
    %488 = vmatpush.msra.mxu0 0.0
    %489 = vmatpush.msra.mxu0 0.0
    %490 = vmatpush.msra.mxu0 0.0
    %491 = vmatpush.msra.mxu0 0.0
    %492 = vmatpush.msra.mxu0 0.0
    %493 = vmatpush.msra.mxu0 0.0
    %494 = vmatpush.msra.mxu0 0.0
    %495 = vmatpush.msra.mxu0 0.0
    %v496 = vand.u32 %v394, 4294901760
    %497 = vmatpush.msra.mxu0 %v496
    %v498 = vand.u32 %v393, 4294901760
    %499 = vmatpush.msra.mxu0 %v498
    %v500 = vand.u32 %v396, 4294901760
    %v501 = vsub.f32 %v396, %v500
    %v502 = vand.u32 %v501, 4294901760
    %503 = vmatmul.f32.gmra.mxu0 %v502
    %v504 = vpop.f32.mrf.mxu0
    %v505 = vadd.f32 %v480, %v504
    %506 = vdwg.mxu0
    %507 = vmatpush.msra.mxu0 0.0
    %508 = vmatpush.msra.mxu0 0.0
    %509 = vmatpush.msra.mxu0 0.0
    %510 = vmatpush.msra.mxu0 0.0
    %511 = vmatpush.msra.mxu0 0.0
    %512 = vmatpush.msra.mxu0 0.0
    %513 = vmatpush.msra.mxu0 0.0
    %514 = vmatpush.msra.mxu0 0.0
    %515 = vmatpush.msra.mxu0 0.0
    %516 = vmatpush.msra.mxu0 0.0
    %517 = vmatpush.msra.mxu0 0.0
    %518 = vmatpush.msra.mxu0 0.0
    %519 = vmatpush.msra.mxu0 0.0
    %520 = vmatpush.msra.mxu0 0.0
    %v521 = vand.u32 %v394, 4294901760
    %v522 = vsub.f32 %v394, %v521
    %v523 = vand.u32 %v522, 4294901760
    %524 = vmatpush.msra.mxu0 %v523
    %v525 = vand.u32 %v393, 4294901760
    %v526 = vsub.f32 %v393, %v525
    %v527 = vand.u32 %v526, 4294901760
    %528 = vmatpush.msra.mxu0 %v527
    %v529 = vand.u32 %v396, 4294901760
    %530 = vmatmul.f32.gmra.mxu0 %v529
    %v531 = vpop.f32.mrf.mxu0
    %v532 = vadd.f32 %v505, %v531
    %533 = vdwg.mxu0
    %534 = vmatpush.msra.mxu0 0.0
    %535 = vmatpush.msra.mxu0 0.0
    %536 = vmatpush.msra.mxu0 0.0
    %537 = vmatpush.msra.mxu0 0.0
    %538 = vmatpush.msra.mxu0 0.0
    %539 = vmatpush.msra.mxu0 0.0
    %540 = vmatpush.msra.mxu0 0.0
    %541 = vmatpush.msra.mxu0 0.0
    %542 = vmatpush.msra.mxu0 0.0
    %543 = vmatpush.msra.mxu0 0.0
    %544 = vmatpush.msra.mxu0 0.0
    %545 = vmatpush.msra.mxu0 0.0
    %546 = vmatpush.msra.mxu0 0.0
    %547 = vmatpush.msra.mxu0 0.0
    %v548 = vand.u32 %v394, 4294901760
    %549 = vmatpush.msra.mxu0 %v548
    %v550 = vand.u32 %v393, 4294901760
    %551 = vmatpush.msra.mxu0 %v550
    %v552 = vand.u32 %v396, 4294901760
    %553 = vmatmul.f32.gmra.mxu0 %v552
    %v554 = vpop.f32.mrf.mxu0
    %v555 = vadd.f32 %v532, %v554
    %556 = vdwg.mxu0
    %v557 = vadd.f32 %v385, %v555
    %558 = vset.pattern.permute.xlu0 3
    %559 = vperm.xlu0 %558, %v42
    %v560 = vpop.permute.xlu0 %559
    %vm561 = vcmp.eq.s32.totalorder %v560, %v45
    %v562 = vsel %vm561, 1, 0
    %v563 = vcvt.s32.f32 %v562
    %v564 = vld [vmem:[#allocation5 + $0x30] sm:$0xff]
    %v565 = vld [vmem:[#allocation5 + $0x38] sm:$0xff]
    %v567 = vsel %vm62, %v563, 0
    %569 = vmatpush.msra.mxu0 0.0
    %570 = vmatpush.msra.mxu0 0.0
    %571 = vmatpush.msra.mxu0 0.0
    %572 = vmatpush.msra.mxu0 0.0
    %573 = vmatpush.msra.mxu0 0.0
    %574 = vmatpush.msra.mxu0 0.0
    %575 = vmatpush.msra.mxu0 0.0
    %576 = vmatpush.msra.mxu0 0.0
    %577 = vmatpush.msra.mxu0 0.0
    %578 = vmatpush.msra.mxu0 0.0
    %579 = vmatpush.msra.mxu0 0.0
    %580 = vmatpush.msra.mxu0 0.0
    %581 = vmatpush.msra.mxu0 0.0
    %582 = vmatpush.msra.mxu0 0.0
    %v583 = vand.u32 %v565, 4294901760
    %584 = vmatpush.msra.mxu0 %v583
    %v585 = vand.u32 %v564, 4294901760
    %586 = vmatpush.msra.mxu0 %v585
    %v587 = vand.u32 %v567, 4294901760
    %v588 = vsub.f32 %v567, %v587
    %v589 = vand.u32 %v588, 4294901760
    %v590 = vsub.f32 %v588, %v589
    %v591 = vand.u32 %v590, 4294901760
    %592 = vmatmul.f32.gmra.mxu0 %v591
    %v593 = vpop.f32.mrf.mxu0
    %v594 = vadd.f32 0.0, %v593
    %595 = vdwg.mxu0
    %596 = vmatpush.msra.mxu0 0.0
    %597 = vmatpush.msra.mxu0 0.0
    %598 = vmatpush.msra.mxu0 0.0
    %599 = vmatpush.msra.mxu0 0.0
    %600 = vmatpush.msra.mxu0 0.0
    %601 = vmatpush.msra.mxu0 0.0
    %602 = vmatpush.msra.mxu0 0.0
    %603 = vmatpush.msra.mxu0 0.0
    %604 = vmatpush.msra.mxu0 0.0
    %605 = vmatpush.msra.mxu0 0.0
    %606 = vmatpush.msra.mxu0 0.0
    %607 = vmatpush.msra.mxu0 0.0
    %608 = vmatpush.msra.mxu0 0.0
    %609 = vmatpush.msra.mxu0 0.0
    %v610 = vand.u32 %v565, 4294901760
    %v611 = vsub.f32 %v565, %v610
    %v612 = vand.u32 %v611, 4294901760
    %v613 = vsub.f32 %v611, %v612
    %v614 = vand.u32 %v613, 4294901760
    %615 = vmatpush.msra.mxu0 %v614
    %v616 = vand.u32 %v564, 4294901760
    %v617 = vsub.f32 %v564, %v616
    %v618 = vand.u32 %v617, 4294901760
    %v619 = vsub.f32 %v617, %v618
    %v620 = vand.u32 %v619, 4294901760
    %621 = vmatpush.msra.mxu0 %v620
    %v622 = vand.u32 %v567, 4294901760
    %623 = vmatmul.f32.gmra.mxu0 %v622
    %v624 = vpop.f32.mrf.mxu0
    %v625 = vadd.f32 %v594, %v624
    %626 = vdwg.mxu0
    %627 = vmatpush.msra.mxu0 0.0
    %628 = vmatpush.msra.mxu0 0.0
    %629 = vmatpush.msra.mxu0 0.0
    %630 = vmatpush.msra.mxu0 0.0
    %631 = vmatpush.msra.mxu0 0.0
    %632 = vmatpush.msra.mxu0 0.0
    %633 = vmatpush.msra.mxu0 0.0
    %634 = vmatpush.msra.mxu0 0.0
    %635 = vmatpush.msra.mxu0 0.0
    %636 = vmatpush.msra.mxu0 0.0
    %637 = vmatpush.msra.mxu0 0.0
    %638 = vmatpush.msra.mxu0 0.0
    %639 = vmatpush.msra.mxu0 0.0
    %640 = vmatpush.msra.mxu0 0.0
    %v641 = vand.u32 %v565, 4294901760
    %v642 = vsub.f32 %v565, %v641
    %643 = vmatpush.msra.mxu0 %v642
    %v644 = vand.u32 %v564, 4294901760
    %v645 = vsub.f32 %v564, %v644
    %646 = vmatpush.msra.mxu0 %v645
    %v647 = vand.u32 %v567, 4294901760
    %v648 = vsub.f32 %v567, %v647
    %649 = vmatmul.f32.gmra.mxu0 %v648
    %v650 = vpop.f32.mrf.mxu0
    %v651 = vadd.f32 %v625, %v650
    %652 = vdwg.mxu0
    %653 = vmatpush.msra.mxu0 0.0
    %654 = vmatpush.msra.mxu0 0.0
    %655 = vmatpush.msra.mxu0 0.0
    %656 = vmatpush.msra.mxu0 0.0
    %657 = vmatpush.msra.mxu0 0.0
    %658 = vmatpush.msra.mxu0 0.0
    %659 = vmatpush.msra.mxu0 0.0
    %660 = vmatpush.msra.mxu0 0.0
    %661 = vmatpush.msra.mxu0 0.0
    %662 = vmatpush.msra.mxu0 0.0
    %663 = vmatpush.msra.mxu0 0.0
    %664 = vmatpush.msra.mxu0 0.0
    %665 = vmatpush.msra.mxu0 0.0
    %666 = vmatpush.msra.mxu0 0.0
    %v667 = vand.u32 %v565, 4294901760
    %668 = vmatpush.msra.mxu0 %v667
    %v669 = vand.u32 %v564, 4294901760
    %670 = vmatpush.msra.mxu0 %v669
    %v671 = vand.u32 %v567, 4294901760
    %v672 = vsub.f32 %v567, %v671
    %v673 = vand.u32 %v672, 4294901760
    %674 = vmatmul.f32.gmra.mxu0 %v673
    %v675 = vpop.f32.mrf.mxu0
    %v676 = vadd.f32 %v651, %v675
    %677 = vdwg.mxu0
    %678 = vmatpush.msra.mxu0 0.0
    %679 = vmatpush.msra.mxu0 0.0
    %680 = vmatpush.msra.mxu0 0.0
    %681 = vmatpush.msra.mxu0 0.0
    %682 = vmatpush.msra.mxu0 0.0
    %683 = vmatpush.msra.mxu0 0.0
    %684 = vmatpush.msra.mxu0 0.0
    %685 = vmatpush.msra.mxu0 0.0
    %686 = vmatpush.msra.mxu0 0.0
    %687 = vmatpush.msra.mxu0 0.0
    %688 = vmatpush.msra.mxu0 0.0
    %689 = vmatpush.msra.mxu0 0.0
    %690 = vmatpush.msra.mxu0 0.0
    %691 = vmatpush.msra.mxu0 0.0
    %v692 = vand.u32 %v565, 4294901760
    %v693 = vsub.f32 %v565, %v692
    %v694 = vand.u32 %v693, 4294901760
    %695 = vmatpush.msra.mxu0 %v694
    %v696 = vand.u32 %v564, 4294901760
    %v697 = vsub.f32 %v564, %v696
    %v698 = vand.u32 %v697, 4294901760
    %699 = vmatpush.msra.mxu0 %v698
    %v700 = vand.u32 %v567, 4294901760
    %701 = vmatmul.f32.gmra.mxu0 %v700
    %v702 = vpop.f32.mrf.mxu0
    %v703 = vadd.f32 %v676, %v702
    %704 = vdwg.mxu0
    %705 = vmatpush.msra.mxu0 0.0
    %706 = vmatpush.msra.mxu0 0.0
    %707 = vmatpush.msra.mxu0 0.0
    %708 = vmatpush.msra.mxu0 0.0
    %709 = vmatpush.msra.mxu0 0.0
    %710 = vmatpush.msra.mxu0 0.0
    %711 = vmatpush.msra.mxu0 0.0
    %712 = vmatpush.msra.mxu0 0.0
    %713 = vmatpush.msra.mxu0 0.0
    %714 = vmatpush.msra.mxu0 0.0
    %715 = vmatpush.msra.mxu0 0.0
    %716 = vmatpush.msra.mxu0 0.0
    %717 = vmatpush.msra.mxu0 0.0
    %718 = vmatpush.msra.mxu0 0.0
    %v719 = vand.u32 %v565, 4294901760
    %720 = vmatpush.msra.mxu0 %v719
    %v721 = vand.u32 %v564, 4294901760
    %722 = vmatpush.msra.mxu0 %v721
    %v723 = vand.u32 %v567, 4294901760
    %724 = vmatmul.f32.gmra.mxu0 %v723
    %v725 = vpop.f32.mrf.mxu0
    %v726 = vadd.f32 %v703, %v725
    %727 = vdwg.mxu0
    %v728 = vadd.f32 %v557, %v726
    %729 = vst [vmem:[#allocation7] sm:$0xf] %v728
    // Predicated region
    $region18: #{tpu_custom_call.1} parent=1 // pred_check
      _
    $region19: #{tpu_custom_call.1} parent=1 // pred_check_branch
      %731 = sbr.rel (0) target = $region21
    $region20: #{tpu_custom_call.1} parent=1 // pred_region
      %733 = vsyncadd [#allocation4], 0
      %s735 = sshll.u32 [#allocation7], 4
      %s736 = int_to_ptr.vmem [resolvable:$true] %s735
      %s737 = sshll.u32 %s2, 4
      %s738 = int_to_ptr.hbm [resolvable:$true] %s737
      %740 = dma.vmem_to_hbm [thread:$0]  %s736, 64, %s738, [#allocation4]
    $region21: #{tpu_custom_call.1} parent=1 // pred_fallthru
      _
    // Predicated region
    $region22: #{tpu_custom_call.1} parent=1 // pred_check
      _
    $region23: #{tpu_custom_call.1} parent=1 // pred_check_branch
      %742 = sbr.rel (0) target = $region25
    $region24: #{tpu_custom_call.1} parent=1 // pred_region
      %744 = dma.done [#allocation4], 64
    $region25: #{tpu_custom_call.1} parent=1 // pred_fallthru
      _
    %745 = vsyncpa [#allocation3], 1
    %746 = vsyncpa [#allocation6], 1
    %747 = vsyncpa [#allocation4], 1

</llo_original>
